<compile_context>
chip_gen: v6e
topology: v6e:2x2x1
jax: 0.10.0
libtpu: 0.0.40
codegen_flags: <defaults>
</compile_context>

<pallas_src>
import math
import functools

import jax
import jax.numpy as jnp
from jax.experimental import pallas as pl
from jax.experimental.pallas import tpu as pltpu


# ----------------------------------------------------------------------------
# Kernel
# ----------------------------------------------------------------------------
def _random_layer_kernel(n_inputs, *refs):
    """Fused: n matmuls (MXU, f32 accumulation) + elementwise product (VPU).

    refs = (x_0, ..., x_{n-1}, w_0, ..., w_{n-1}, out)
      x_i : [TB, D_i]   current batch tile of input i
      w_i : [D_i, TN]   current output-column tile of (pre-scaled) weight i
      out : [TB, TN]
    The 1/output_dim**(1/n) scale is already folded into w_0.
    """
    x_refs = refs[:n_inputs]
    w_refs = refs[n_inputs:2 * n_inputs]
    out_ref = refs[2 * n_inputs]

    acc = jnp.dot(x_refs[0][...], w_refs[0][...],
                  preferred_element_type=jnp.float32)
    for i in range(1, n_inputs):
        acc = acc * jnp.dot(x_refs[i][...], w_refs[i][...],
                            preferred_element_type=jnp.float32)
    out_ref[...] = acc.astype(out_ref.dtype)


# ----------------------------------------------------------------------------
# Tiling heuristics
# ----------------------------------------------------------------------------
def _pick_tiles(B, output_dim):
    """Pick (tile_b, tile_n): lane-dense, big, spill-safe, v7x-friendly."""
    # Batch tile: whole batch when small; 128 rows when B is a large multiple.
    if B <= 128 or B % 128 != 0:
        tile_b = B
    else:
        tile_b = 128

    # Output tile: as wide as possible (multiple of 128, divides output_dim),
    # bounded so the live f32 accumulator tile stays <= ~64 vregs (256 KiB).
    acc_budget_bytes = 256 * 1024
    max_n = max(128, acc_budget_bytes // (max(tile_b, 8) * 4))

    tile_n = output_dim  # full-dim block is always layout-legal
    if output_dim % 128 == 0:
        for cand in (2048, 1024, 512, 256, 128):
            if cand <= max_n and output_dim % cand == 0:
                tile_n = cand
                break
        # v7x has 2 TensorCores: for large outputs keep >= 2 parallel grid
        # steps instead of collapsing everything into a single step.
        total_steps = (B // tile_b) * (output_dim // tile_n)
        if total_steps == 1 and output_dim >= 1024 and (output_dim // 2) % 128 == 0:
            tile_n = output_dim // 2
    return tile_b, tile_n


# ----------------------------------------------------------------------------
# Parameter preparation ("parameter-creation time")
# ----------------------------------------------------------------------------
def prepare_random_matrices(raw_matrices, output_dim, param_dtype=jnp.bfloat16):
    """Fold the static 1/output_dim**(1/n) scale into w_0 and cast to bf16."""
    n = len(raw_matrices)
    scale = 1.0 / math.pow(float(output_dim), 1.0 / n)
    prepared = []
    for i, w in enumerate(raw_matrices):
        w = w.astype(jnp.float32)
        if i == 0:
            w = w * scale
        prepared.append(w.astype(param_dtype))
    return prepared


# ----------------------------------------------------------------------------
# Wrapper
# ----------------------------------------------------------------------------
def random_layer(input_list, random_matrices, *, out_dtype=jnp.float32,
                 tile_b=None, tile_n=None):
    """Pallas implementation of RandomLayer.forward.

    `random_matrices` must come from prepare_random_matrices (scale folded in).
    """
    n = len(input_list)
    assert n == len(random_matrices) and n >= 1
    B = input_list[0].shape[0]
    output_dim = random_matrices[0].shape[1]
    for x, w in zip(input_list, random_matrices):
        assert x.shape[0] == B and x.shape[1] == w.shape[0]
        assert w.shape[1] == output_dim

    auto_tb, auto_tn = _pick_tiles(B, output_dim)
    tile_b = auto_tb if tile_b is None else tile_b
    tile_n = auto_tn if tile_n is None else tile_n
    assert B % tile_b == 0 and output_dim % tile_n == 0

    grid = (B // tile_b, output_dim // tile_n)
    kernel = functools.partial(_random_layer_kernel, n)

    # Inputs: full contraction dim, tiled over batch. Weights: tiled over the
    # output columns only (reused across batch tiles). Output: [tile_b, tile_n].
    in_specs = (
        [pl.BlockSpec((tile_b, x.shape[1]), lambda i, j: (i, 0))
         for x in input_list] +
        [pl.BlockSpec((w.shape[0], tile_n), lambda i, j: (0, j))
         for w in random_matrices]
    )
    out_spec = pl.BlockSpec((tile_b, tile_n), lambda i, j: (i, j))

    # Advisory cost estimate: lets XLA overlap this tiny, DMA-bound kernel.
    out_bytes = B * output_dim * jnp.dtype(out_dtype).itemsize
    flops = sum(2 * B * x.shape[1] * output_dim for x in input_list)
    flops += (n - 1) * B * output_dim
    bytes_accessed = (
        sum(int(x.size) * x.dtype.itemsize for x in input_list)
        + sum(int(w.size) * w.dtype.itemsize for w in random_matrices)
        + out_bytes)
    cost = pl.CostEstimate(flops=int(flops), transcendentals=0,
                           bytes_accessed=int(bytes_accessed))

    # Per-step double-buffered working set; only raise the scoped VMEM limit
    # when needed (v7x: 64 MiB physical, 32 MiB scoped default).
    working_set = 2 * (
        sum(tile_b * x.shape[1] * x.dtype.itemsize for x in input_list)
        + sum(w.shape[0] * tile_n * w.dtype.itemsize for w in random_matrices)
        + tile_b * tile_n * jnp.dtype(out_dtype).itemsize)
    vmem_limit = None
    if working_set > 32 * 1024 * 1024:
        vmem_limit = min(int(working_set * 3 // 2), 100 * 1024 * 1024)

    return pl.pallas_call(
        kernel,
        out_shape=jax.ShapeDtypeStruct((B, output_dim), out_dtype),
        grid_spec=pltpu.PrefetchScalarGridSpec(
            num_scalar_prefetch=0,
            grid=grid,
            in_specs=in_specs,
            out_specs=out_spec,
        ),
        compiler_params=pltpu.CompilerParams(
            dimension_semantics=("parallel", "parallel"),
            vmem_limit_bytes=vmem_limit),
        cost_estimate=cost,
    )(*input_list, *random_matrices)


# ----------------------------------------------------------------------------
# Pure-JAX references
# ----------------------------------------------------------------------------
def random_layer_reference(input_list, raw_matrices, output_dim):
    """Matches the PyTorch forward exactly (unscaled raw matrices, f32)."""
    ys = [jnp.dot(x.astype(jnp.float32), w.astype(jnp.float32),
                  precision=jax.lax.Precision.HIGHEST)
          for x, w in zip(input_list, raw_matrices)]
    out = ys[0] / math.pow(float(output_dim), 1.0 / len(ys))
    for y in ys[1:]:
        out = out * y
    return out


def _kernel_numerics_reference(input_list, prepared_matrices):
    """Same operand dtypes / f32 accumulation as the kernel (tight check)."""
    out = None
    for x, w in zip(input_list, prepared_matrices):
        y = jnp.dot(x, w, preferred_element_type=jnp.float32)
        out = y if out is None else out * y
    return out


# ----------------------------------------------------------------------------
# Demo / self-test
# ----------------------------------------------------------------------------
if __name__ == "__main__":
    # Typical CDAN usage: two inputs (features [B, 32], softmax [B, 16]).
    B = 8
    input_dim_list = [32, 16]
    output_dim = 256

    key = jax.random.PRNGKey(0)
    keys = jax.random.split(key, 2 * len(input_dim_list))

    # Raw torch.randn-style parameters (f32) ...
    raw_matrices = [
        jax.random.normal(keys[i], (input_dim_list[i], output_dim), jnp.float32)
        for i in range(len(input_dim_list))
    ]
    # ... prepared once at parameter-creation time: scale folded into w_0, bf16.
    random_matrices = prepare_random_matrices(raw_matrices, output_dim,
                                              param_dtype=jnp.bfloat16)

    x_f32 = [
        jax.random.normal(keys[len(input_dim_list) + i],
                          (B, input_dim_list[i]), jnp.float32)
        for i in range(len(input_dim_list))
    ]
    # Stream activations in bf16 too (matmul accumulates in f32 in-kernel).
    input_list = [x.astype(jnp.bfloat16) for x in x_f32]

    out = random_layer(input_list, random_matrices, out_dtype=jnp.float32)
    out = jax.block_until_ready(out)
    assert out.shape == (B, output_dim)

    # Tight check: same bf16 operands / f32 accumulation as the kernel.
    tight_ref = _kernel_numerics_reference(input_list, random_matrices)
    assert jnp.allclose(out, tight_ref, rtol=1e-3, atol=1e-3), \
        "mismatch vs kernel-numerics reference"

    # Loose check: full-f32 PyTorch-semantics reference (bf16 rounding slack).
    torch_ref = random_layer_reference(x_f32, raw_matrices, output_dim)
    assert jnp.allclose(out, torch_ref, rtol=0.2, atol=1.0), \
        "mismatch vs f32 PyTorch-semantics reference"

    print("KERNEL_OK")
</pallas_src>

<mosaic_0001>
module attributes {stable_mosaic.version = 11 : i64} {
  func.func @_random_layer_kernel(%arg0: i32, %arg1: i32, %arg2: memref<8x32xbf16, #tpu.memory_space<vmem>>, %arg3: memref<8x16xbf16, #tpu.memory_space<vmem>>, %arg4: memref<32x256xbf16, #tpu.memory_space<vmem>>, %arg5: memref<16x256xbf16, #tpu.memory_space<vmem>>, %arg6: memref<8x256xf32, #tpu.memory_space<vmem>>) attributes {dimension_semantics = [#tpu.dimension_semantics<parallel>, #tpu.dimension_semantics<parallel>], iteration_bounds = array<i64: 1, 1>, scalar_prefetch = 0 : i64, scratch_operands = 0 : i64, tpu.core_type = #tpu.core_type<tc>, window_params = [{transform_indices = @transform_0, window_bounds = array<i64: 8, 32>}, {transform_indices = @transform_1, window_bounds = array<i64: 8, 16>}, {transform_indices = @transform_2, window_bounds = array<i64: 32, 256>}, {transform_indices = @transform_3, window_bounds = array<i64: 16, 256>}, {transform_indices = @transform_4, window_bounds = array<i64: 8, 256>}]} {
    %c0 = arith.constant 0 : index
    %c0_0 = arith.constant 0 : index
    %0 = vector.load %arg2[%c0, %c0_0] : memref<8x32xbf16, #tpu.memory_space<vmem>>, vector<8x32xbf16>
    %c0_1 = arith.constant 0 : index
    %c0_2 = arith.constant 0 : index
    %1 = vector.load %arg4[%c0_1, %c0_2] : memref<32x256xbf16, #tpu.memory_space<vmem>>, vector<32x256xbf16>
    %cst = arith.constant dense<0.000000e+00> : vector<8x256xf32>
    %2 = tpu.matmul %0, %1, %cst {dimension_numbers = #tpu.dot_dimension_numbers<[1], [0], [0], [1], [0, 0, 1, 1], [], []>} : vector<8x32xbf16>, vector<32x256xbf16>, vector<8x256xf32> -> vector<8x256xf32>
    %c0_3 = arith.constant 0 : index
    %c0_4 = arith.constant 0 : index
    %3 = vector.load %arg3[%c0_3, %c0_4] : memref<8x16xbf16, #tpu.memory_space<vmem>>, vector<8x16xbf16>
    %c0_5 = arith.constant 0 : index
    %c0_6 = arith.constant 0 : index
    %4 = vector.load %arg5[%c0_5, %c0_6] : memref<16x256xbf16, #tpu.memory_space<vmem>>, vector<16x256xbf16>
    %cst_7 = arith.constant dense<0.000000e+00> : vector<8x256xf32>
    %5 = tpu.matmul %3, %4, %cst_7 {dimension_numbers = #tpu.dot_dimension_numbers<[1], [0], [0], [1], [0, 0, 1, 1], [], []>} : vector<8x16xbf16>, vector<16x256xbf16>, vector<8x256xf32> -> vector<8x256xf32>
    %6 = arith.mulf %2, %5 : vector<8x256xf32>
    %c0_8 = arith.constant 0 : index
    %c0_9 = arith.constant 0 : index
    %7 = vector.load %arg6[%c0_8, %c0_9] : memref<8x256xf32, #tpu.memory_space<vmem>>, vector<8x256xf32>
    tpu.vector_store %arg6[%c0_8, %c0_9], %6 {strides = array<i32>} : memref<8x256xf32, #tpu.memory_space<vmem>>, vector<8x256xf32>,
    return
  }
  func.func @transform_0(%arg0: i32, %arg1: i32) -> (i32, i32) {
    %c0_i32 = arith.constant 0 : i32
    %c0_i32_0 = arith.constant 0 : i32
    return %arg0, %c0_i32 : i32, i32
  }
  func.func @transform_1(%arg0: i32, %arg1: i32) -> (i32, i32) {
    %c0_i32 = arith.constant 0 : i32
    %c0_i32_0 = arith.constant 0 : i32
    return %arg0, %c0_i32 : i32, i32
  }
  func.func @transform_2(%arg0: i32, %arg1: i32) -> (i32, i32) {
    %c0_i32 = arith.constant 0 : i32
    %c0_i32_0 = arith.constant 0 : i32
    return %c0_i32, %arg1 : i32, i32
  }
  func.func @transform_3(%arg0: i32, %arg1: i32) -> (i32, i32) {
    %c0_i32 = arith.constant 0 : i32
    %c0_i32_0 = arith.constant 0 : i32
    return %c0_i32, %arg1 : i32, i32
  }
  func.func @transform_4(%arg0: i32, %arg1: i32) -> (i32, i32) {
    %c0_i32 = arith.constant 0 : i32
    return %arg0, %arg1 : i32, i32
  }
}

</mosaic_0001>

<llo_original>
// kernel: tpu_custom_call.1
$region0: #{tpu_custom_call.1}
  #allocation0 [shape = 'u32[]', space=smem, size = 0x4, offset = 0x4, fixed_abs, tag = 'smem constant byte address 0x4 - core index']
  #allocation1 [shape = 'u32[144,128]{1,0:T(1,128)}', space=vmem, size = 0x12000, scoped, tag = 'internal scratch']
  %s0 = inlined_call_operand.hbm [shape: bf16[8,32], index: 0, kind: input, shape index: {}]
  %s1 = inlined_call_operand.hbm [shape: bf16[8,16], index: 1, kind: input, shape index: {}]
  %s2 = inlined_call_operand.hbm [shape: bf16[32,256], index: 2, kind: input, shape index: {}]
  %s3 = inlined_call_operand.hbm [shape: bf16[16,256], index: 3, kind: input, shape index: {}]
  %s4 = inlined_call_operand.hbm [shape: f32[8,256], index: 4, kind: output, shape index: {}]
  %s5 = sld [smem:[#allocation0]]
  $region42: #{tpu_custom_call.1} parent=0
    _
  %s7 = ssub.s32 1, %s5
  %s8 = scalar_select 0, %s7, %s5
  $region1: #{tpu_custom_call.1} parent=0
    #allocation2 [shape = 'u8[2048]{0}', space=vmem, size = 0x800, scoped, tag = 'input window, operand 0, single buffered']
    #allocation3 [shape = 's32[1]{0}', space=sflag, size = 0x4, scoped, tag = 'scoped memory for tpu_custom_call.1']
    #allocation4 [shape = 's32[1]{0}', space=sflag, size = 0x4, scoped, tag = 'scoped memory for tpu_custom_call.1']
    #allocation5 [shape = 'u8[2048]{0}', space=vmem, size = 0x800, scoped, tag = 'input window, operand 1, single buffered']
    #allocation6 [shape = 's32[1]{0}', space=sflag, size = 0x4, scoped, tag = 'scoped memory for tpu_custom_call.1']
    #allocation7 [shape = 'u8[16384]{0}', space=vmem, size = 0x4000, scoped, tag = 'input window, operand 2, single buffered']
    #allocation8 [shape = 'u8[8192]{0}', space=vmem, size = 0x2000, scoped, tag = 'input window, operand 3, single buffered']
    #allocation9 [shape = 's32[1]{0}', space=sflag, size = 0x4, scoped, tag = 'scoped memory for tpu_custom_call.1']
    #allocation10 [shape = 'u8[8192]{0}', space=vmem, size = 0x2000, scoped, tag = 'output window, operand 0, single buffered']
    %9 = vsyncpa [#allocation3], 0
    %10 = vsyncpa [#allocation6], 0
    %11 = vsyncpa [#allocation9], 0
    %12 = vsyncpa [#allocation4], 0
    // Predicated region
    $region2: #{tpu_custom_call.1} parent=1 // pred_check
      _
    $region3: #{tpu_custom_call.1} parent=1 // pred_check_branch
      %14 = sbr.rel (0) target = $region5
    $region4: #{tpu_custom_call.1} parent=1 // pred_region
      %s16 = ssub.s32 64, 64
      %17 = vsyncadd [#allocation3], %s16
      %s19 = sshll.u32 [#allocation2], 4
      %s20 = int_to_ptr.vmem [resolvable:$true] %s19
      %22 = dma.hbm_to_vmem [thread:$0]  %s0, 64, %s20, [#allocation3]
    $region5: #{tpu_custom_call.1} parent=1 // pred_fallthru
      _
    // Predicated region
    $region6: #{tpu_custom_call.1} parent=1 // pred_check
      _
    $region7: #{tpu_custom_call.1} parent=1 // pred_check_branch
      %24 = sbr.rel (0) target = $region9
    $region8: #{tpu_custom_call.1} parent=1 // pred_region
      %s26 = ssub.s32 64, 64
      %27 = vsyncadd [#allocation6], %s26
      %s29 = sshll.u32 [#allocation5], 4
      %s30 = int_to_ptr.vmem [resolvable:$true] %s29
      %32 = dma.hbm_to_vmem [thread:$0]  %s1, 64, %s30, [#allocation6]
    $region9: #{tpu_custom_call.1} parent=1 // pred_fallthru
      _
    // Predicated region
    $region10: #{tpu_custom_call.1} parent=1 // pred_check
      _
    $region11: #{tpu_custom_call.1} parent=1 // pred_check_branch
      %34 = sbr.rel (0) target = $region13
    $region12: #{tpu_custom_call.1} parent=1 // pred_region
      %s36 = ssub.s32 512, 512
      %37 = vsyncadd [#allocation6], %s36
      %s38 = sshll.u32 [#allocation7], 4
      %s39 = int_to_ptr.vmem [resolvable:$true] %s38
      %44 = dma.hbm_to_vmem [thread:$0]  %s2, 512, %s39, [#allocation6], 128, 128, 8
    $region13: #{tpu_custom_call.1} parent=1 // pred_fallthru
      _
    // Predicated region
    $region14: #{tpu_custom_call.1} parent=1 // pred_check
      _
    $region15: #{tpu_custom_call.1} parent=1 // pred_check_branch
      %46 = sbr.rel (0) target = $region17
    $region16: #{tpu_custom_call.1} parent=1 // pred_region
      %s48 = ssub.s32 256, 256
      %49 = vsyncadd [#allocation9], %s48
      %s50 = sshll.u32 [#allocation8], 4
      %s51 = int_to_ptr.vmem [resolvable:$true] %s50
      %56 = dma.hbm_to_vmem [thread:$0]  %s3, 256, %s51, [#allocation9], 128, 128, 8
    $region17: #{tpu_custom_call.1} parent=1 // pred_fallthru
      _
    // Predicated region
    $region18: #{tpu_custom_call.1} parent=1 // pred_check
      _
    $region19: #{tpu_custom_call.1} parent=1 // pred_check_branch
      %58 = sbr.rel (0) target = $region21
    $region20: #{tpu_custom_call.1} parent=1 // pred_region
      %59 = dma.done [#allocation3], 64
    $region21: #{tpu_custom_call.1} parent=1 // pred_fallthru
      _
    // Predicated region
    $region22: #{tpu_custom_call.1} parent=1 // pred_check
      _
    $region23: #{tpu_custom_call.1} parent=1 // pred_check_branch
      %61 = sbr.rel (0) target = $region25
    $region24: #{tpu_custom_call.1} parent=1 // pred_region
      %62 = dma.done [#allocation6], 64
    $region25: #{tpu_custom_call.1} parent=1 // pred_fallthru
      _
    // Predicated region
    $region26: #{tpu_custom_call.1} parent=1 // pred_check
      _
    $region27: #{tpu_custom_call.1} parent=1 // pred_check_branch
      %64 = sbr.rel (0) target = $region29
    $region28: #{tpu_custom_call.1} parent=1 // pred_region
      %65 = dma.done [#allocation6], 512
    $region29: #{tpu_custom_call.1} parent=1 // pred_fallthru
      _
    // Predicated region
    $region30: #{tpu_custom_call.1} parent=1 // pred_check
      _
    $region31: #{tpu_custom_call.1} parent=1 // pred_check_branch
      %67 = sbr.rel (0) target = $region33
    $region32: #{tpu_custom_call.1} parent=1 // pred_region
      %68 = dma.done [#allocation9], 256
    $region33: #{tpu_custom_call.1} parent=1 // pred_fallthru
      _
    %v70 = vld [vmem:[#allocation2] sm:$0xf]
    %v71 = vld [vmem:[#allocation7] sm:$0xff]
    %v72 = vld [vmem:[#allocation7 + $0x8] sm:$0xff]
    %v73 = vld [vmem:[#allocation7 + $0x10] sm:$0xff]
    %v74 = vld [vmem:[#allocation7 + $0x18] sm:$0xff]
    %v79 = vunpack.c.l.b16 %v71
    %v80 = vunpack.c.h.b16 %v71
    %v81 = vunpack.c.l.b16 %v72
    %v82 = vunpack.c.h.b16 %v72
    %v83 = vunpack.c.l.b16 %v73
    %v84 = vunpack.c.h.b16 %v73
    %v85 = vunpack.c.l.b16 %v74
    %v86 = vunpack.c.h.b16 %v74
    %v87 = vpack.c.b16 %v81, %v79
    %v88 = vpack.c.b16 %v82, %v80
    %v89 = vpack.c.b16 %v85, %v83
    %v90 = vpack.c.b16 %v86, %v84
    %vm95 = vcmask 261120
    %v97 = vsel %vm95, %v70, 0
    %99 = vmatprep.subr.bf16.mxu0 0
    %100 = vmatpush1.bf16.msra.mxu0 0
    %101 = vmatprep.subr.bf16.mxu0 0
    %102 = vmatpush1.bf16.msra.mxu0 0
    %103 = vmatprep.subr.bf16.mxu0 0
    %104 = vmatpush1.bf16.msra.mxu0 0
    %105 = vmatprep.subr.bf16.mxu0 0
    %106 = vmatpush1.bf16.msra.mxu0 0
    %107 = vmatprep.subr.bf16.mxu0 0
    %108 = vmatpush1.bf16.msra.mxu0 0
    %109 = vmatprep.subr.bf16.mxu0 0
    %110 = vmatpush1.bf16.msra.mxu0 0
    %111 = vmatprep.subr.bf16.mxu0 %v90
    %112 = vmatpush1.bf16.msra.mxu0 %v89
    %113 = vmatprep.subr.bf16.mxu0 %v88
    %114 = vmatpush1.bf16.msra.mxu0 %v87
    %115 = vmatprep.subr.bf16.mxu0 0
    %116 = vmatpush2.bf16.msra.mxu0 0
    %117 = vmatprep.subr.bf16.mxu0 0
    %118 = vmatpush2.bf16.msra.mxu0 0
    %119 = vmatprep.subr.bf16.mxu0 0
    %120 = vmatpush2.bf16.msra.mxu0 0
    %121 = vmatprep.subr.bf16.mxu0 0
    %122 = vmatpush2.bf16.msra.mxu0 0
    %123 = vmatprep.subr.bf16.mxu0 0
    %124 = vmatpush2.bf16.msra.mxu0 0
    %125 = vmatprep.subr.bf16.mxu0 0
    %126 = vmatpush2.bf16.msra.mxu0 0
    %127 = vmatprep.subr.bf16.mxu0 0
    %128 = vmatpush2.bf16.msra.mxu0 0
    %129 = vmatprep.subr.bf16.mxu0 0
    %130 = vmatpush2.bf16.msra.mxu0 0
    %131 = vmatprep.mubr.bf16.mxu0 0
    %132 = vmatmul.mubr.bf16.gmra.mxu0 %v97
    %v133 = vpop.f32.mrf.mxu0
    %v134 = vadd.f32 0.0, %v133
    %v135 = vpop.f32.mrf.mxu0
    %v136 = vadd.f32 0.0, %v135
    %v137 = vpop.f32.mrf.mxu0
    %v138 = vpop.f32.mrf.mxu0
    %139 = vdwg.mxu0
    %v140 = vld [vmem:[#allocation5] sm:$0xf]
    %v141 = vld [vmem:[#allocation8] sm:$0xff]
    %v142 = vld [vmem:[#allocation8 + $0x8] sm:$0xff]
    %v145 = vunpack.c.l.b16 %v141
    %v146 = vunpack.c.h.b16 %v141
    %v147 = vunpack.c.l.b16 %v142
    %v148 = vunpack.c.h.b16 %v142
    %v149 = vpack.c.b16 %v147, %v145
    %v150 = vpack.c.b16 %v148, %v146
    %vm153 = vcmask 130048
    %v155 = vsel %vm153, %v140, 0
    %157 = vmatprep.subr.bf16.mxu0 0
    %158 = vmatpush1.bf16.msra.mxu0 0
    %159 = vmatprep.subr.bf16.mxu0 0
    %160 = vmatpush1.bf16.msra.mxu0 0
    %161 = vmatprep.subr.bf16.mxu0 0
    %162 = vmatpush1.bf16.msra.mxu0 0
    %163 = vmatprep.subr.bf16.mxu0 0
    %164 = vmatpush1.bf16.msra.mxu0 0
    %165 = vmatprep.subr.bf16.mxu0 0
    %166 = vmatpush1.bf16.msra.mxu0 0
    %167 = vmatprep.subr.bf16.mxu0 0
    %168 = vmatpush1.bf16.msra.mxu0 0
    %169 = vmatprep.subr.bf16.mxu0 0
    %170 = vmatpush1.bf16.msra.mxu0 0
    %171 = vmatprep.subr.bf16.mxu0 %v150
    %172 = vmatpush1.bf16.msra.mxu0 %v149
    %173 = vmatprep.subr.bf16.mxu0 0
    %174 = vmatpush2.bf16.msra.mxu0 0
    %175 = vmatprep.subr.bf16.mxu0 0
    %176 = vmatpush2.bf16.msra.mxu0 0
    %177 = vmatprep.subr.bf16.mxu0 0
    %178 = vmatpush2.bf16.msra.mxu0 0
    %179 = vmatprep.subr.bf16.mxu0 0
    %180 = vmatpush2.bf16.msra.mxu0 0
    %181 = vmatprep.subr.bf16.mxu0 0
    %182 = vmatpush2.bf16.msra.mxu0 0
    %183 = vmatprep.subr.bf16.mxu0 0
    %184 = vmatpush2.bf16.msra.mxu0 0
    %185 = vmatprep.subr.bf16.mxu0 0
    %186 = vmatpush2.bf16.msra.mxu0 0
    %187 = vmatprep.subr.bf16.mxu0 0
    %188 = vmatpush2.bf16.msra.mxu0 0
    %189 = vmatprep.mubr.bf16.mxu0 0
    %190 = vmatmul.mubr.bf16.gmra.mxu0 %v155
    %v191 = vpop.f32.mrf.mxu0
    %v192 = vadd.f32 0.0, %v191
    %v193 = vpop.f32.mrf.mxu0
    %v194 = vadd.f32 0.0, %v193
    %v195 = vpop.f32.mrf.mxu0
    %v196 = vpop.f32.mrf.mxu0
    %197 = vdwg.mxu0
    %v198 = vmul.f32 %v134, %v192
    %v199 = vmul.f32 %v136, %v194
    %200 = vst [vmem:[#allocation10] sm:$0xff] %v198
    %201 = vst [vmem:[#allocation10 + $0x8] sm:$0xff] %v199
    // Predicated region
    $region34: #{tpu_custom_call.1} parent=1 // pred_check
      _
    $region35: #{tpu_custom_call.1} parent=1 // pred_check_branch
      %203 = sbr.rel (0) target = $region37
    $region36: #{tpu_custom_call.1} parent=1 // pred_region
      %s205 = ssub.s32 256, 256
      %206 = vsyncadd [#allocation4], %s205
      %s208 = sshll.u32 [#allocation10], 4
      %s209 = int_to_ptr.vmem [resolvable:$true] %s208
      %211 = dma.vmem_to_hbm [thread:$0]  %s209, 256, %s4, [#allocation4]
    $region37: #{tpu_custom_call.1} parent=1 // pred_fallthru
      _
    // Predicated region
    $region38: #{tpu_custom_call.1} parent=1 // pred_check
      _
    $region39: #{tpu_custom_call.1} parent=1 // pred_check_branch
      %213 = sbr.rel (0) target = $region41
    $region40: #{tpu_custom_call.1} parent=1 // pred_region
      %214 = dma.done [#allocation4], 256
    $region41: #{tpu_custom_call.1} parent=1 // pred_fallthru
      _
    %215 = vsyncpa [#allocation3], 1
    %216 = vsyncpa [#allocation6], 1
    %217 = vsyncpa [#allocation9], 1
    %218 = vsyncpa [#allocation4], 1

</llo_original>
